<compile_context>
chip_gen: v6e
topology: v6e:2x2x1
jax: 0.10.0
libtpu: 0.0.40
codegen_flags: <defaults>
</compile_context>

<pallas_src>
import jax
import jax.numpy as jnp
from jax.experimental import pallas as pl
from jax.experimental.pallas import tpu as pltpu


def _identity_kernel(x_ref, o_ref):
    # Whole-tile copy: one unmasked VMEM load + store per block.
    o_ref[...] = x_ref[...]


def _tile_budget():
    """(target_tile_bytes, vmem_limit_bytes), generation-aware."""
    try:
        info = pltpu.get_tpu_info()
        vmem_bytes = getattr(info, "vmem_capacity_bytes", None)
    except Exception:  # query unavailable (e.g. CPU trace) -> conservative
        vmem_bytes = None
    if vmem_bytes is not None and vmem_bytes >= 96 * 1024 * 1024:
        # v5e / v6e: 128 MiB physical VMEM.  8 MiB tiles halve the ~0.35 us
        # per-grid-step overhead; residency = 2 bufs x 2 arrays x 8 MiB = 32 MiB.
        return 8 * 1024 * 1024, 48 * 1024 * 1024
    # v7x (64 MiB / TC) or unknown: 4 MiB tiles -> 16 MiB resident.
    return 4 * 1024 * 1024, 32 * 1024 * 1024


def _identity_copy(x: jax.Array) -> jax.Array:
    """Materialized identity: bit-exact copy via a tiled Pallas kernel."""
    orig_shape = x.shape
    dtype = x.dtype
    itemsize = jnp.dtype(dtype).itemsize

    total = 1
    for d in orig_shape:
        total *= d
    if total == 0:
        return x  # nothing to copy

    target_bytes, vmem_limit = _tile_budget()

    # Sublane multiple accounts for sub-32-bit packing (8 f32, 16 bf16, 32 i8).
    sub_mult = 8 * max(1, 4 // itemsize)

    # Lane width: power-of-two multiple of 128 (unmasked vst fast path),
    # capped so a single sub_mult-row tile always fits the byte budget.
    max_row_bytes = target_bytes // sub_mult
    lanes = 128
    while (lanes * 2) * itemsize <= max_row_bytes and (lanes * 2) <= total:
        lanes *= 2

    # Pad the flat array to a multiple of the lane width, then tile normally.
    padded_total = pl.cdiv(total, lanes) * lanes
    rows = padded_total // lanes
    row_bytes = lanes * itemsize

    # Largest sub_mult-multiple row-tile that fits the byte budget.
    max_tile_rows = max(sub_mult, ((target_bytes // row_bytes) // sub_mult) * sub_mult)
    tile_rows = min(rows, max_tile_rows)

    # v7x megacore: guarantee >= 2 grid steps for arrays bigger than ~2 MiB so
    # the "parallel" axis actually splits work across both TensorCores.
    if (
        tile_rows >= rows
        and padded_total * itemsize > (2 << 20)
        and rows >= 2 * sub_mult
    ):
        half = -(-((rows + 1) // 2) // sub_mult) * sub_mult
        tile_rows = min(rows, max(sub_mult, half))

    grid = (pl.cdiv(rows, tile_rows),)

    x_flat = x.reshape(-1)
    if padded_total != total:
        x_flat = jnp.pad(x_flat, (0, padded_total - total))
    x2d = x_flat.reshape(rows, lanes)

    out2d = pl.pallas_call(
        _identity_kernel,
        out_shape=jax.ShapeDtypeStruct((rows, lanes), dtype),
        grid=grid,
        in_specs=[pl.BlockSpec((tile_rows, lanes), lambda i: (i, 0))],
        out_specs=pl.BlockSpec((tile_rows, lanes), lambda i: (i, 0)),
        compiler_params=pltpu.CompilerParams(
            dimension_semantics=("parallel",),  # shards across v7x's 2 TCs
            vmem_limit_bytes=vmem_limit,
        ),
        cost_estimate=pl.CostEstimate(
            flops=0,
            transcendentals=0,
            bytes_accessed=2 * padded_total * itemsize,
        ),
    )(x2d)

    out_flat = out2d.reshape(-1)
    if padded_total != total:
        out_flat = out_flat[:total]
    return out_flat.reshape(orig_shape)


def identity(x: jax.Array, materialize: bool = False) -> jax.Array:
    """Identity forward pass.

    Default (materialize=False): returns `x` unchanged — zero HBM traffic,
    which is the correct implementation of nn.Identity.
    materialize=True: produces a fresh, bit-exact copy via the Pallas kernel.
    """
    if not materialize:
        return x
    return _identity_copy(x)


if __name__ == "__main__":
    key = jax.random.PRNGKey(0)
    k0, k1, k2 = jax.random.split(key, 3)

    # Small NCHW input consistent with a typical conv-net feature map.
    x = jax.random.normal(k0, (2, 4, 16, 16), dtype=jnp.float32)

    # Zero-cost path (the real nn.Identity semantics).
    y = identity(x)
    # Pallas copy path — exercised so the kernel compiles & runs on TPU.
    y_copy = identity(x, materialize=True)
    jax.block_until_ready(y_copy)

    assert y.shape == x.shape and y.dtype == x.dtype
    assert y_copy.shape == x.shape and y_copy.dtype == x.dtype
    assert bool(jnp.all(y == x)), "identity output differs from input"
    assert bool(jnp.all(y_copy == x)), "copied identity output differs from input"

    # bf16 path (exercises the sub_mult=16 tiling fix).
    xb = jax.random.normal(k1, (2, 4, 16, 16), dtype=jnp.float32).astype(jnp.bfloat16)
    yb = identity(xb, materialize=True)
    jax.block_until_ready(yb)
    assert yb.shape == xb.shape and yb.dtype == xb.dtype
    assert bool(jnp.all(yb == xb)), "bf16 copied identity differs from input"

    # Non-128-multiple size (exercises the pad-and-slice path).
    xo = jax.random.normal(k2, (3, 5, 7), dtype=jnp.float32)  # 105 elements
    yo = identity(xo, materialize=True)
    jax.block_until_ready(yo)
    assert yo.shape == xo.shape and yo.dtype == xo.dtype
    assert bool(jnp.all(yo == xo)), "odd-size copied identity differs from input"

    print("KERNEL_OK")
</pallas_src>

<mosaic_0001>
module attributes {stable_mosaic.version = 11 : i64} {
  func.func @_identity_kernel(%arg0: i32, %arg1: memref<1x2048xf32, #tpu.memory_space<vmem>>, %arg2: memref<1x2048xf32, #tpu.memory_space<vmem>>) attributes {dimension_semantics = [#tpu.dimension_semantics<parallel>], iteration_bounds = array<i64: 1>, scalar_prefetch = 0 : i64, scratch_operands = 0 : i64, tpu.core_type = #tpu.core_type<tc>, window_params = [{transform_indices = @transform_0, window_bounds = array<i64: 1, 2048>}, {transform_indices = @transform_1, window_bounds = array<i64: 1, 2048>}]} {
    %c0 = arith.constant 0 : index
    %c0_0 = arith.constant 0 : index
    %0 = vector.load %arg1[%c0, %c0_0] : memref<1x2048xf32, #tpu.memory_space<vmem>>, vector<1x2048xf32>
    %c0_1 = arith.constant 0 : index
    %c0_2 = arith.constant 0 : index
    %1 = vector.load %arg2[%c0_1, %c0_2] : memref<1x2048xf32, #tpu.memory_space<vmem>>, vector<1x2048xf32>
    tpu.vector_store %arg2[%c0_1, %c0_2], %0 {strides = array<i32>} : memref<1x2048xf32, #tpu.memory_space<vmem>>, vector<1x2048xf32>,
    return
  }
  func.func @transform_0(%arg0: i32) -> (i32, i32) {
    %c0_i32 = arith.constant 0 : i32
    %c0_i32_0 = arith.constant 0 : i32
    return %arg0, %c0_i32 : i32, i32
  }
  func.func @transform_1(%arg0: i32) -> (i32, i32) {
    %c0_i32 = arith.constant 0 : i32
    %c0_i32_0 = arith.constant 0 : i32
    return %arg0, %c0_i32 : i32, i32
  }
}

</mosaic_0001>

<llo_original>
// kernel: tpu_custom_call.1
$region0: #{tpu_custom_call.1}
  #allocation0 [shape = 'u32[]', space=smem, size = 0x4, offset = 0x4, fixed_abs, tag = 'smem constant byte address 0x4 - core index']
  #allocation1 [shape = 'u32[144,128]{1,0:T(1,128)}', space=vmem, size = 0x12000, scoped, tag = 'internal scratch']
  %s0 = inlined_call_operand.hbm [shape: f32[1,2048], index: 0, kind: input, shape index: {}]
  %s1 = inlined_call_operand.hbm [shape: f32[1,2048], index: 1, kind: output, shape index: {}]
  %s2 = sld [smem:[#allocation0]]
  $region18: #{tpu_custom_call.1} parent=0
    _
  %s4 = ssub.s32 1, %s2
  %s5 = scalar_select 0, %s4, %s2
  $region1: #{tpu_custom_call.1} parent=0
    #allocation2 [shape = 'u8[8192]{0}', space=vmem, size = 0x2000, scoped, tag = 'input window, operand 0, single buffered']
    #allocation3 [shape = 's32[1]{0}', space=sflag, size = 0x4, scoped, tag = 'scoped memory for tpu_custom_call.1']
    #allocation4 [shape = 's32[1]{0}', space=sflag, size = 0x4, scoped, tag = 'scoped memory for tpu_custom_call.1']
    #allocation5 [shape = 'u8[8192]{0}', space=vmem, size = 0x2000, scoped, tag = 'output window, operand 0, single buffered']
    %6 = vsyncpa [#allocation3], 0
    %7 = vsyncpa [#allocation4], 0
    // Predicated region
    $region2: #{tpu_custom_call.1} parent=1 // pred_check
      _
    $region3: #{tpu_custom_call.1} parent=1 // pred_check_branch
      %9 = sbr.rel (0) target = $region5
    $region4: #{tpu_custom_call.1} parent=1 // pred_region
      %s11 = ssub.s32 256, 256
      %12 = vsyncadd [#allocation3], %s11
      %s14 = sshll.u32 [#allocation2], 4
      %s15 = int_to_ptr.vmem [resolvable:$true] %s14
      %17 = dma.hbm_to_vmem [thread:$0]  %s0, 256, %s15, [#allocation3]
    $region5: #{tpu_custom_call.1} parent=1 // pred_fallthru
      _
    // Predicated region
    $region6: #{tpu_custom_call.1} parent=1 // pred_check
      _
    $region7: #{tpu_custom_call.1} parent=1 // pred_check_branch
      %19 = sbr.rel (0) target = $region9
    $region8: #{tpu_custom_call.1} parent=1 // pred_region
      %20 = dma.done [#allocation3], 256
    $region9: #{tpu_custom_call.1} parent=1 // pred_fallthru
      _
    %v21 = vld [vmem:[#allocation2] sm:$0xff]
    %v22 = vld [vmem:[#allocation2 + $0x8] sm:$0xff]
    %23 = vst [vmem:[#allocation5] sm:$0xff] %v21
    %24 = vst [vmem:[#allocation5 + $0x8] sm:$0xff] %v22
    // Predicated region
    $region10: #{tpu_custom_call.1} parent=1 // pred_check
      _
    $region11: #{tpu_custom_call.1} parent=1 // pred_check_branch
      %26 = sbr.rel (0) target = $region13
    $region12: #{tpu_custom_call.1} parent=1 // pred_region
      %s28 = ssub.s32 256, 256
      %29 = vsyncadd [#allocation4], %s28
      %s31 = sshll.u32 [#allocation5], 4
      %s32 = int_to_ptr.vmem [resolvable:$true] %s31
      %34 = dma.vmem_to_hbm [thread:$0]  %s32, 256, %s1, [#allocation4]
    $region13: #{tpu_custom_call.1} parent=1 // pred_fallthru
      _
    // Predicated region
    $region14: #{tpu_custom_call.1} parent=1 // pred_check
      _
    $region15: #{tpu_custom_call.1} parent=1 // pred_check_branch
      %36 = sbr.rel (0) target = $region17
    $region16: #{tpu_custom_call.1} parent=1 // pred_region
      %37 = dma.done [#allocation4], 256
    $region17: #{tpu_custom_call.1} parent=1 // pred_fallthru
      _
    %38 = vsyncpa [#allocation3], 1
    %39 = vsyncpa [#allocation4], 1

</llo_original>
